<compile_context>
chip_gen: v5e
topology: v5e:2x2
jax: 0.10.0
libtpu: 0.0.40
codegen_flags: <defaults>
</compile_context>

<pallas_src>
import functools

import jax
import jax.numpy as jnp
from jax import lax
from jax.experimental import pallas as pl
from jax.experimental.pallas import tpu as pltpu


_PER_BUFFER_TARGET_BYTES = 8 * 1024 * 1024   # ~85%+ of HBM roofline per measured tiling data
_FALLBACK_VMEM_BYTES = 64 * 1024 * 1024      # v7x per-TensorCore VMEM (most conservative)


def _round_up(x, m):
    return ((x + m - 1) // m) * m


def _vmem_capacity_bytes():
    """Physical VMEM of the attached chip (64 MiB on v7x, 128 MiB on v5e/v6e)."""
    try:
        info = pltpu.get_tpu_info()
        cap = getattr(info, "vmem_capacity_bytes", None)
        if cap:
            return int(cap)
    except Exception:
        pass
    return _FALLBACK_VMEM_BYTES


def _plan_tiles(n, c, itemsize, logits_budget):
    """Pick lane-aligned tile rows (multiple of 128) with multi-MiB blocks."""
    row_bytes = max(1, c * itemsize)
    per_buffer_cap = max(logits_budget // 2, 128 * row_bytes)   # never below 128 rows
    per_buffer = min(_PER_BUFFER_TARGET_BYTES, per_buffer_cap)
    rows = max(128, per_buffer // row_bytes)
    rows = min(rows, _round_up(max(n, 1), 128))
    tn = (rows // 128) * 128
    if n % 128 == 0:
        # Prefer an exact divisor of n (no padding copy of the big logits tensor).
        t = tn
        while t >= 128:
            if n % t == 0:
                tn = t
                break
            t -= 128
    num_tiles = -(-n // tn)
    return tn, num_tiles * tn, num_tiles


def _crl_fused_kernel(corr_ref, logits_ref, loss_ref, conf_vmem, *, n):
    """Per-tile conf = max softmax, plus fused ranking-loss epilogue at the last tile."""
    i = pl.program_id(0)
    tn = logits_ref.shape[0]
    c = logits_ref.shape[1]
    n_pad = conf_vmem.shape[1]

    # ---- conf = max(softmax(x)) == 1 / sum(exp(x - rowmax)), lane-dense (1, tn) ----
    x = logits_ref[...].astype(jnp.float32)                 # bf16 stays bf16 on the wire
    m = jnp.max(x, axis=-1, keepdims=True)                  # (tn, 1)
    e = jnp.exp(x - m)                                      # (tn, c), EUP
    # Row-sum on the idle MXU (contract the class dims) so the per-row scalars land
    # directly on lanes -- no sublane->lane relayout.  hi/lo split keeps the result
    # accurate to ~f32 regardless of how the MXU handles f32 operands.
    e_hi = e.astype(jnp.bfloat16).astype(jnp.float32)
    e_lo = e - e_hi
    ones = jnp.ones((1, c), dtype=jnp.float32)
    dn = (((1,), (1,)), ((), ()))                           # contract last dims (doc-preferred form)
    s = (lax.dot_general(ones, e_hi, dn, preferred_element_type=jnp.float32)
         + lax.dot_general(ones, e_lo, dn, preferred_element_type=jnp.float32))  # (1, tn)
    start = pl.multiple_of(i * tn, 128)                     # tn is a multiple of 128
    conf_vmem[:, pl.ds(start, tn)] = pl.reciprocal(s, approx=False)

    # ---- epilogue: MarginRankingLoss(margin=0, reduction='mean') on (1, n_pad) ----
    @pl.when(i == pl.num_programs(0) - 1)
    def _():
        conf = conf_vmem[...]                               # (1, n_pad) f32
        corr = corr_ref[...]                                # (1, n_pad) f32
        shift = n_pad - 1                                   # circular shift by one (== torch.roll(x, -1))
        conf_roll = pltpu.roll(conf, shift=shift, axis=1)   # XLU slot -- free here
        corr_roll = pltpu.roll(corr, shift=shift, axis=1)

        # correct_log.get_target_margin: target in {-1, 0, +1}, margin = |c1 - c2|
        target = (jnp.where(corr > corr_roll, 1.0, 0.0)
                  - jnp.where(corr < corr_roll, 1.0, 0.0))
        margin = jnp.abs(corr - corr_roll)
        # margin == 0 exactly whenever target == 0, so the 1e-7 epsilon is inert.
        conf_roll = conf_roll + margin / (target + 1e-7)

        # mean(max(0, -target * (x1 - x2))); padded lanes replicate sample 0 so they
        # contribute exactly 0, and the mean divides by the true batch size n.
        elem = jnp.maximum(0.0, -target * (conf - conf_roll))
        loss_ref[...] = jnp.sum(elem, axis=1, keepdims=True) * (1.0 / n)


def crl_criterion(output, image_idx, correctness, max_correctness):
    """Pallas implementation of CRL_Criterion.forward."""
    n, c = output.shape
    itemsize = jnp.dtype(output.dtype).itemsize

    # History._normalize + gather by image_idx: O(N) index glue, stays in XLA.
    corr_tab = correctness.astype(jnp.float32)
    cmin = jnp.min(corr_tab)
    corr = (corr_tab[image_idx] - cmin) / (jnp.float32(max_correctness) - cmin)   # (n,)

    cap = _vmem_capacity_bytes()
    vmem_limit = (cap * 3) // 4                       # 48 MiB on v7x, 96 MiB on v5e/v6e
    tn, n_pad, num_tiles = _plan_tiles(n, c, itemsize, vmem_limit // 2)

    # Pad the batch by replicating sample 0 (only when n has no lane-aligned divisor):
    # padded rows yield conf == conf[0] and corr == corr[0], so every padded rank pair
    # is a zero-loss pair and the cyclic roll over n_pad entries matches torch.roll
    # over the first n entries exactly.
    if n_pad != n:
        pad = n_pad - n
        logits_p = jnp.concatenate(
            [output, jnp.broadcast_to(output[:1], (pad, c))], axis=0)
        corr_p = jnp.concatenate([corr, jnp.broadcast_to(corr[:1], (pad,))], axis=0)
    else:
        logits_p, corr_p = output, corr
    corr_lane = corr_p.reshape(1, n_pad)

    loss = pl.pallas_call(
        functools.partial(_crl_fused_kernel, n=n),
        out_shape=jax.ShapeDtypeStruct((1, 1), jnp.float32),
        grid=(num_tiles,),
        in_specs=[
            pl.BlockSpec((1, n_pad), lambda i: (0, 0)),    # corr: resident across steps
            pl.BlockSpec((tn, c), lambda i: (i, 0)),       # logits tiles, native dtype
        ],
        out_specs=pl.BlockSpec((1, 1), lambda i: (0, 0)),
        scratch_shapes=[pltpu.VMEM((1, n_pad), jnp.float32)],   # persistent lane-dense conf
        compiler_params=pltpu.CompilerParams(
            dimension_semantics=("arbitrary",),            # persistent scratch -> sequential
            vmem_limit_bytes=int(vmem_limit),
        ),
        cost_estimate=pl.CostEstimate(
            flops=6 * n_pad * c,
            transcendentals=n_pad * c,                     # one exp per logit
            bytes_accessed=n_pad * c * itemsize + n_pad * 4 + 4,
        ),
    )(corr_lane, logits_p)
    return loss[0, 0]


def _reference(output, image_idx, correctness, max_correctness):
    """Pure-JAX reference mirroring the PyTorch forward exactly."""
    probs = jax.nn.softmax(output.astype(jnp.float32), axis=1)
    conf = probs.max(axis=1)
    conf_roll = jnp.roll(conf, -1)
    idx_roll = jnp.roll(image_idx, -1)
    cmin = jnp.min(correctness)
    t1 = (correctness[image_idx] - cmin) / (max_correctness - cmin)
    t2 = (correctness[idx_roll] - cmin) / (max_correctness - cmin)
    target = (t1 > t2).astype(jnp.float32) - (t1 < t2).astype(jnp.float32)
    margin = jnp.abs(t1 - t2)
    conf_roll = conf_roll + margin / (target + 1e-7)
    return jnp.mean(jnp.maximum(0.0, -target * (conf - conf_roll)))


if __name__ == "__main__":
    key = jax.random.PRNGKey(0)
    k1, k2, k3 = jax.random.split(key, 3)

    N, C = 8, 16          # batch, num_classes
    num_samples = 64      # size of the History correctness table
    max_correctness = 5.0

    logits_f32 = jax.random.normal(k1, (N, C), dtype=jnp.float32)
    image_idx = jax.random.permutation(k2, num_samples)[:N]
    correctness = jax.random.randint(k3, (num_samples,), 0, 5).astype(jnp.float32)

    loss = jax.block_until_ready(
        crl_criterion(logits_f32, image_idx, correctness, max_correctness))
    ref = jax.block_until_ready(
        _reference(logits_f32, image_idx, correctness, max_correctness))
    assert abs(float(loss) - float(ref)) < 5e-5, (float(loss), float(ref))

    # bf16 logits stay bf16 on the wire; the f32 upcast happens in VMEM.
    logits_bf16 = logits_f32.astype(jnp.bfloat16)
    loss_bf16 = jax.block_until_ready(
        crl_criterion(logits_bf16, image_idx, correctness, max_correctness))
    ref_bf16 = jax.block_until_ready(
        _reference(logits_bf16, image_idx, correctness, max_correctness))
    assert abs(float(loss_bf16) - float(ref_bf16)) < 2e-4, (float(loss_bf16), float(ref_bf16))

    print("KERNEL_OK")
</pallas_src>

<mosaic_0001>
module attributes {stable_mosaic.version = 11 : i64} {
  func.func @_crl_fused_kernel(%arg0: i32, %arg1: memref<1x128xf32, #tpu.memory_space<vmem>>, %arg2: memref<128x16xf32, #tpu.memory_space<vmem>>, %arg3: memref<1x1xf32, #tpu.memory_space<vmem>>, %arg4: memref<1x128xf32, #tpu.memory_space<vmem>>) attributes {dimension_semantics = [#tpu.dimension_semantics<arbitrary>], iteration_bounds = array<i64: 1>, scalar_prefetch = 0 : i64, scratch_operands = 1 : i64, tpu.core_type = #tpu.core_type<tc>, window_params = [{pipeline_mode = #tpu.pipeline_mode<synchronous>, transform_indices = @transform_0, window_bounds = array<i64: 1, 128>}, {transform_indices = @transform_1, window_bounds = array<i64: 128, 16>}, {pipeline_mode = #tpu.pipeline_mode<synchronous>, transform_indices = @transform_2, window_bounds = array<i64: 1, 1>}]} {
    %c0 = arith.constant 0 : index
    %c0_0 = arith.constant 0 : index
    %0 = vector.load %arg2[%c0, %c0_0] : memref<128x16xf32, #tpu.memory_space<vmem>>, vector<128x16xf32>
    %cst = arith.constant dense<0xFF800000> : vector<128xf32>
    %1 = vector.multi_reduction <maximumf>, %0, %cst [1] : vector<128x16xf32> to vector<128xf32>
    %2 = vector.shape_cast %1 : vector<128xf32> to vector<128x1xf32>
    %3 = vector.broadcast %2 : vector<128x1xf32> to vector<128x16xf32>
    %4 = arith.subf %0, %3 : vector<128x16xf32>
    %5 = math.exp %4 : vector<128x16xf32>
    %6 = arith.truncf %5 : vector<128x16xf32> to vector<128x16xbf16>
    %7 = arith.extf %6 : vector<128x16xbf16> to vector<128x16xf32>
    %8 = arith.subf %5, %7 : vector<128x16xf32>
    %cst_1 = arith.constant 1.000000e+00 : f32
    %9 = vector.broadcast %cst_1 : f32 to vector<1x16xf32>
    %cst_2 = arith.constant dense<0.000000e+00> : vector<1x128xf32>
    %10 = tpu.matmul %9, %7, %cst_2 {dimension_numbers = #tpu.dot_dimension_numbers<[1], [1], [0], [0], [0, 0, 1, 0], [], []>} : vector<1x16xf32>, vector<128x16xf32>, vector<1x128xf32> -> vector<1x128xf32>
    %cst_3 = arith.constant dense<0.000000e+00> : vector<1x128xf32>
    %11 = tpu.matmul %9, %8, %cst_3 {dimension_numbers = #tpu.dot_dimension_numbers<[1], [1], [0], [0], [0, 0, 1, 0], [], []>} : vector<1x16xf32>, vector<128x16xf32>, vector<1x128xf32> -> vector<1x128xf32>
    %12 = arith.addf %10, %11 : vector<1x128xf32>
    %c128_i32 = arith.constant 128 : i32
    %13 = arith.muli %arg0, %c128_i32 : i32
    %14 = tpu.assume_multiple %13, 128 : i32
    %15 = tpu.reciprocal %12 : vector<1x128xf32> -> vector<1x128xf32>
    %c0_4 = arith.constant 0 : index
    %16 = arith.index_cast %14 : i32 to index
    %17 = vector.load %arg4[%c0_4, %16] : memref<1x128xf32, #tpu.memory_space<vmem>>, vector<1x128xf32>
    tpu.vector_store %arg4[%c0_4, %16], %15 {strides = array<i32>} : memref<1x128xf32, #tpu.memory_space<vmem>>, vector<1x128xf32>,
    %c0_i32 = arith.constant 0 : i32
    %18 = arith.cmpi eq, %arg0, %c0_i32 : i32
    %19 = arith.extui %18 : i1 to i32
    %c0_i32_5 = arith.constant 0 : i32
    %20 = arith.cmpi ne, %19, %c0_i32_5 : i32
    scf.if %20 {
      %c0_6 = arith.constant 0 : index
      %c0_7 = arith.constant 0 : index
      %21 = vector.load %arg4[%c0_6, %c0_7] : memref<1x128xf32, #tpu.memory_space<vmem>>, vector<1x128xf32>
      %c0_8 = arith.constant 0 : index
      %c0_9 = arith.constant 0 : index
      %22 = vector.load %arg1[%c0_8, %c0_9] : memref<1x128xf32, #tpu.memory_space<vmem>>, vector<1x128xf32>
      %c127_i32 = arith.constant 127 : i32
      %23 = tpu.dynamic_rotate %21 by %c127_i32 dim 1 : vector<1x128xf32>, i32 -> vector<1x128xf32>
      %c127_i32_10 = arith.constant 127 : i32
      %24 = tpu.dynamic_rotate %22 by %c127_i32_10 dim 1 : vector<1x128xf32>, i32 -> vector<1x128xf32>
      %25 = arith.cmpf ogt, %22, %24 : vector<1x128xf32>
      %cst_11 = arith.constant 1.000000e+00 : f32
      %cst_12 = arith.constant 0.000000e+00 : f32
      %26 = vector.broadcast %cst_11 : f32 to vector<1x128xf32>
      %27 = vector.broadcast %cst_12 : f32 to vector<1x128xf32>
      %28 = arith.select %25, %26, %27 : vector<1x128xi1>, vector<1x128xf32>
      %29 = arith.cmpf olt, %22, %24 : vector<1x128xf32>
      %cst_13 = arith.constant 1.000000e+00 : f32
      %cst_14 = arith.constant 0.000000e+00 : f32
      %30 = vector.broadcast %cst_13 : f32 to vector<1x128xf32>
      %31 = vector.broadcast %cst_14 : f32 to vector<1x128xf32>
      %32 = arith.select %29, %30, %31 : vector<1x128xi1>, vector<1x128xf32>
      %33 = arith.subf %28, %32 : vector<1x128xf32>
      %34 = arith.subf %22, %24 : vector<1x128xf32>
      %35 = math.absf %34 : vector<1x128xf32>
      %cst_15 = arith.constant 1.000000e-07 : f32
      %36 = vector.broadcast %cst_15 : f32 to vector<1x128xf32>
      %37 = arith.addf %33, %36 : vector<1x128xf32>
      %38 = arith.divf %35, %37 : vector<1x128xf32>
      %39 = arith.addf %23, %38 : vector<1x128xf32>
      %cst_16 = arith.constant 0.000000e+00 : f32
      %40 = vector.broadcast %cst_16 : f32 to vector<1x128xf32>
      %41 = arith.subf %40, %33 : vector<1x128xf32>
      %42 = arith.subf %21, %39 : vector<1x128xf32>
      %43 = arith.mulf %41, %42 : vector<1x128xf32>
      %cst_17 = arith.constant 0.000000e+00 : f32
      %44 = vector.broadcast %cst_17 : f32 to vector<1x128xf32>
      %45 = arith.maximumf %44, %43 : vector<1x128xf32>
      %cst_18 = arith.constant dense<0.000000e+00> : vector<1xf32>
      %46 = vector.multi_reduction <add>, %45, %cst_18 [1] : vector<1x128xf32> to vector<1xf32>
      %47 = vector.shape_cast %46 : vector<1xf32> to vector<1x1xf32>
      %cst_19 = arith.constant 1.250000e-01 : f32
      %48 = vector.broadcast %cst_19 : f32 to vector<1x1xf32>
      %49 = arith.mulf %47, %48 : vector<1x1xf32>
      %c0_20 = arith.constant 0 : index
      %c0_21 = arith.constant 0 : index
      %50 = vector.load %arg3[%c0_20, %c0_21] : memref<1x1xf32, #tpu.memory_space<vmem>>, vector<1x1xf32>
      tpu.vector_store %arg3[%c0_20, %c0_21], %49 {strides = array<i32>} : memref<1x1xf32, #tpu.memory_space<vmem>>, vector<1x1xf32>,
    } else {
    }
    return
  }
  func.func @transform_0(%arg0: i32) -> (i32, i32) {
    %c0_i32 = arith.constant 0 : i32
    %c0_i32_0 = arith.constant 0 : i32
    %c0_i32_1 = arith.constant 0 : i32
    return %c0_i32, %c0_i32_0 : i32, i32
  }
  func.func @transform_1(%arg0: i32) -> (i32, i32) {
    %c0_i32 = arith.constant 0 : i32
    %c0_i32_0 = arith.constant 0 : i32
    return %arg0, %c0_i32 : i32, i32
  }
  func.func @transform_2(%arg0: i32) -> (i32, i32) {
    %c0_i32 = arith.constant 0 : i32
    %c0_i32_0 = arith.constant 0 : i32
    %c0_i32_1 = arith.constant 0 : i32
    return %c0_i32, %c0_i32_0 : i32, i32
  }
}

</mosaic_0001>

<llo_original>
// kernel: tpu_custom_call.1
$region0: #{tpu_custom_call.1}
  #allocation0 [shape = 'u32[]', space=smem, size = 0x4, offset = 0x4, fixed_abs, tag = 'smem constant byte address 0x4 - core index']
  #allocation1 [shape = 'u32[72,128]{1,0:T(1,128)}', space=vmem, size = 0x9000, scoped, tag = 'internal scratch']
  #allocation2 [shape = 'f32[1,128]{1,0:T(1,128)}', space=vmem, size = 0x200, scoped, tag = 'scratch operand']
  %s0 = inlined_call_operand.vmem [shape: f32[1,128], index: 0, kind: input, shape index: {}]
  %s1 = inlined_call_operand.vmem [shape: f32[128,16], index: 1, kind: input, shape index: {}]
  %s2 = inlined_call_operand.hbm [shape: f32[1,1], index: 2, kind: output, shape index: {}]
  %s3 = sld [smem:[#allocation0]]
  $region22: #{tpu_custom_call.1} parent=0
    _
  %s5 = ssub.s32 1, %s3
  %s6 = scalar_select 0, %s5, %s3
  $region1: #{tpu_custom_call.1} parent=0
    #allocation3 [shape = 'u8[512]{0}', space=vmem, size = 0x400, scoped, tag = 'output window, operand 0, single buffered']
    #allocation4 [shape = 's32[1]{0}', space=sflag, size = 0x4, scoped, tag = 'scoped memory for tpu_custom_call.1']
    %7 = vsyncpa [#allocation4], 0
    // Predicated region
    $region2: #{tpu_custom_call.1} parent=1 // pred_check
      _
    $region3: #{tpu_custom_call.1} parent=1 // pred_check_branch
      %9 = sbr.rel (0) target = $region5
    $region4: #{tpu_custom_call.1} parent=1 // pred_region
      _
    $region5: #{tpu_custom_call.1} parent=1 // pred_fallthru
      _
    // Predicated region
    $region6: #{tpu_custom_call.1} parent=1 // pred_check
      _
    $region7: #{tpu_custom_call.1} parent=1 // pred_check_branch
      %11 = sbr.rel (0) target = $region9
    $region8: #{tpu_custom_call.1} parent=1 // pred_region
      _
    $region9: #{tpu_custom_call.1} parent=1 // pred_fallthru
      _
    %v12 = vld [vmem:[%s1] sm:$0xff]
    %v13 = vld [vmem:[%s1 + $0x8] sm:$0xff]
    %v14 = vld [vmem:[%s1 + $0x10] sm:$0xff]
    %v15 = vld [vmem:[%s1 + $0x18] sm:$0xff]
    %v16 = vld [vmem:[%s1 + $0x20] sm:$0xff]
    %v17 = vld [vmem:[%s1 + $0x28] sm:$0xff]
    %v18 = vld [vmem:[%s1 + $0x30] sm:$0xff]
    %v19 = vld [vmem:[%s1 + $0x38] sm:$0xff]
    %v20 = vld [vmem:[%s1 + $0x40] sm:$0xff]
    %v21 = vld [vmem:[%s1 + $0x48] sm:$0xff]
    %v22 = vld [vmem:[%s1 + $0x50] sm:$0xff]
    %v23 = vld [vmem:[%s1 + $0x58] sm:$0xff]
    %v24 = vld [vmem:[%s1 + $0x60] sm:$0xff]
    %v25 = vld [vmem:[%s1 + $0x68] sm:$0xff]
    %v26 = vld [vmem:[%s1 + $0x70] sm:$0xff]
    %v27 = vld [vmem:[%s1 + $0x78] sm:$0xff]
    %vm28 = vcmask 130048
    %v29 = vsel %vm28, %v12, -inf
    %30 = vmax.xlane.f32.xlu0 %v29
    %v31 = vpop.xlane.xlu0 %30
    %v32 = vsel %vm28, %v13, -inf
    %33 = vmax.xlane.f32.xlu0 %v32
    %v34 = vpop.xlane.xlu0 %33
    %v35 = vsel %vm28, %v14, -inf
    %36 = vmax.xlane.f32.xlu0 %v35
    %v37 = vpop.xlane.xlu0 %36
    %v38 = vsel %vm28, %v15, -inf
    %39 = vmax.xlane.f32.xlu0 %v38
    %v40 = vpop.xlane.xlu0 %39
    %v41 = vsel %vm28, %v16, -inf
    %42 = vmax.xlane.f32.xlu0 %v41
    %v43 = vpop.xlane.xlu0 %42
    %v44 = vsel %vm28, %v17, -inf
    %45 = vmax.xlane.f32.xlu0 %v44
    %v46 = vpop.xlane.xlu0 %45
    %v47 = vsel %vm28, %v18, -inf
    %48 = vmax.xlane.f32.xlu0 %v47
    %v49 = vpop.xlane.xlu0 %48
    %v50 = vsel %vm28, %v19, -inf
    %51 = vmax.xlane.f32.xlu0 %v50
    %v52 = vpop.xlane.xlu0 %51
    %v53 = vsel %vm28, %v20, -inf
    %54 = vmax.xlane.f32.xlu0 %v53
    %v55 = vpop.xlane.xlu0 %54
    %v56 = vsel %vm28, %v21, -inf
    %57 = vmax.xlane.f32.xlu0 %v56
    %v58 = vpop.xlane.xlu0 %57
    %v59 = vsel %vm28, %v22, -inf
    %60 = vmax.xlane.f32.xlu0 %v59
    %v61 = vpop.xlane.xlu0 %60
    %v62 = vsel %vm28, %v23, -inf
    %63 = vmax.xlane.f32.xlu0 %v62
    %v64 = vpop.xlane.xlu0 %63
    %v65 = vsel %vm28, %v24, -inf
    %66 = vmax.xlane.f32.xlu0 %v65
    %v67 = vpop.xlane.xlu0 %66
    %v68 = vsel %vm28, %v25, -inf
    %69 = vmax.xlane.f32.xlu0 %v68
    %v70 = vpop.xlane.xlu0 %69
    %v71 = vsel %vm28, %v26, -inf
    %72 = vmax.xlane.f32.xlu0 %v71
    %v73 = vpop.xlane.xlu0 %72
    %v74 = vsel %vm28, %v27, -inf
    %75 = vmax.xlane.f32.xlu0 %v74
    %v76 = vpop.xlane.xlu0 %75
    %v77 = vsub.f32 %v12, %v31
    %v78 = vsub.f32 %v13, %v34
    %v79 = vsub.f32 %v14, %v37
    %v80 = vsub.f32 %v15, %v40
    %v81 = vsub.f32 %v16, %v43
    %v82 = vsub.f32 %v17, %v46
    %v83 = vsub.f32 %v18, %v49
    %v84 = vsub.f32 %v19, %v52
    %v85 = vsub.f32 %v20, %v55
    %v86 = vsub.f32 %v21, %v58
    %v87 = vsub.f32 %v22, %v61
    %v88 = vsub.f32 %v23, %v64
    %v89 = vsub.f32 %v24, %v67
    %v90 = vsub.f32 %v25, %v70
    %v91 = vsub.f32 %v26, %v73
    %v92 = vsub.f32 %v27, %v76
    %v93 = vmul.f32 %v77, 1.442695
    %v94 = vpow.pop %v93
    %v95 = vmul.f32 %v78, 1.442695
    %v96 = vpow.pop %v95
    %v97 = vmul.f32 %v79, 1.442695
    %v98 = vpow.pop %v97
    %v99 = vmul.f32 %v80, 1.442695
    %v100 = vpow.pop %v99
    %v101 = vmul.f32 %v81, 1.442695
    %v102 = vpow.pop %v101
    %v103 = vmul.f32 %v82, 1.442695
    %v104 = vpow.pop %v103
    %v105 = vmul.f32 %v83, 1.442695
    %v106 = vpow.pop %v105
    %v107 = vmul.f32 %v84, 1.442695
    %v108 = vpow.pop %v107
    %v109 = vmul.f32 %v85, 1.442695
    %v110 = vpow.pop %v109
    %v111 = vmul.f32 %v86, 1.442695
    %v112 = vpow.pop %v111
    %v113 = vmul.f32 %v87, 1.442695
    %v114 = vpow.pop %v113
    %v115 = vmul.f32 %v88, 1.442695
    %v116 = vpow.pop %v115
    %v117 = vmul.f32 %v89, 1.442695
    %v118 = vpow.pop %v117
    %v119 = vmul.f32 %v90, 1.442695
    %v120 = vpow.pop %v119
    %v121 = vmul.f32 %v91, 1.442695
    %v122 = vpow.pop %v121
    %v123 = vmul.f32 %v92, 1.442695
    %v124 = vpow.pop %v123
    %v125 = vpack.c.bf16 %v94, %v94
    %v126 = vpack.c.bf16 %v96, %v96
    %v127 = vpack.c.bf16 %v98, %v98
    %v128 = vpack.c.bf16 %v100, %v100
    %v129 = vpack.c.bf16 %v102, %v102
    %v130 = vpack.c.bf16 %v104, %v104
    %v131 = vpack.c.bf16 %v106, %v106
    %v132 = vpack.c.bf16 %v108, %v108
    %v133 = vpack.c.bf16 %v110, %v110
    %v134 = vpack.c.bf16 %v112, %v112
    %v135 = vpack.c.bf16 %v114, %v114
    %v136 = vpack.c.bf16 %v116, %v116
    %v137 = vpack.c.bf16 %v118, %v118
    %v138 = vpack.c.bf16 %v120, %v120
    %v139 = vpack.c.bf16 %v122, %v122
    %v140 = vpack.c.bf16 %v124, %v124
    %v141 = vunpack.c.l.bf16 %v125
    %v142 = vunpack.c.l.bf16 %v126
    %v143 = vunpack.c.l.bf16 %v127
    %v144 = vunpack.c.l.bf16 %v128
    %v145 = vunpack.c.l.bf16 %v129
    %v146 = vunpack.c.l.bf16 %v130
    %v147 = vunpack.c.l.bf16 %v131
    %v148 = vunpack.c.l.bf16 %v132
    %v149 = vunpack.c.l.bf16 %v133
    %v150 = vunpack.c.l.bf16 %v134
    %v151 = vunpack.c.l.bf16 %v135
    %v152 = vunpack.c.l.bf16 %v136
    %v153 = vunpack.c.l.bf16 %v137
    %v154 = vunpack.c.l.bf16 %v138
    %v155 = vunpack.c.l.bf16 %v139
    %v156 = vunpack.c.l.bf16 %v140
    %v157 = vsub.f32 %v94, %v141
    %v158 = vsub.f32 %v96, %v142
    %v159 = vsub.f32 %v98, %v143
    %v160 = vsub.f32 %v100, %v144
    %v161 = vsub.f32 %v102, %v145
    %v162 = vsub.f32 %v104, %v146
    %v163 = vsub.f32 %v106, %v147
    %v164 = vsub.f32 %v108, %v148
    %v165 = vsub.f32 %v110, %v149
    %v166 = vsub.f32 %v112, %v150
    %v167 = vsub.f32 %v114, %v151
    %v168 = vsub.f32 %v116, %v152
    %v169 = vsub.f32 %v118, %v153
    %v170 = vsub.f32 %v120, %v154
    %v171 = vsub.f32 %v122, %v155
    %v172 = vsub.f32 %v124, %v156
    %v174 = vsel %vm28, 1.0, 0
    %v177 = vsel %vm28, %v157, 0
    %v180 = vsel %vm28, %v158, 0
    %v183 = vsel %vm28, %v159, 0
    %v186 = vsel %vm28, %v160, 0
    %v189 = vsel %vm28, %v161, 0
    %v192 = vsel %vm28, %v162, 0
    %v195 = vsel %vm28, %v163, 0
    %v198 = vsel %vm28, %v164, 0
    %v201 = vsel %vm28, %v165, 0
    %v204 = vsel %vm28, %v166, 0
    %v207 = vsel %vm28, %v167, 0
    %v210 = vsel %vm28, %v168, 0
    %v213 = vsel %vm28, %v169, 0
    %v216 = vsel %vm28, %v170, 0
    %v219 = vsel %vm28, %v171, 0
    %v222 = vsel %vm28, %v172, 0
    %224 = vmatpush.xpose.msra.mxu0 %v222
    %225 = vmatpush.xpose.msra.mxu0 %v219
    %226 = vmatpush.xpose.msra.mxu0 %v216
    %227 = vmatpush.xpose.msra.mxu0 %v213
    %228 = vmatpush.xpose.msra.mxu0 %v210
    %229 = vmatpush.xpose.msra.mxu0 %v207
    %230 = vmatpush.xpose.msra.mxu0 %v204
    %231 = vmatpush.xpose.msra.mxu0 %v201
    %232 = vmatpush.xpose.msra.mxu0 %v198
    %233 = vmatpush.xpose.msra.mxu0 %v195
    %234 = vmatpush.xpose.msra.mxu0 %v192
    %235 = vmatpush.xpose.msra.mxu0 %v189
    %236 = vmatpush.xpose.msra.mxu0 %v186
    %237 = vmatpush.xpose.msra.mxu0 %v183
    %238 = vmatpush.xpose.msra.mxu0 %v180
    %239 = vmatpush.xpose.msra.mxu0 %v177
    %240 = vmatmul.f32.gmra.mxu0 %v174
    %v241 = vpop.f32.mrf.mxu0
    %v242 = vadd.f32 0.0, %v241
    %243 = vdwg.mxu0
    %v245 = vsel %vm28, %v141, 0
    %v248 = vsel %vm28, %v142, 0
    %v251 = vsel %vm28, %v143, 0
    %v254 = vsel %vm28, %v144, 0
    %v257 = vsel %vm28, %v145, 0
    %v260 = vsel %vm28, %v146, 0
    %v263 = vsel %vm28, %v147, 0
    %v266 = vsel %vm28, %v148, 0
    %v269 = vsel %vm28, %v149, 0
    %v272 = vsel %vm28, %v150, 0
    %v275 = vsel %vm28, %v151, 0
    %v278 = vsel %vm28, %v152, 0
    %v281 = vsel %vm28, %v153, 0
    %v284 = vsel %vm28, %v154, 0
    %v287 = vsel %vm28, %v155, 0
    %v290 = vsel %vm28, %v156, 0
    %292 = vmatpush.xpose.msra.mxu0 %v290
    %293 = vmatpush.xpose.msra.mxu0 %v287
    %294 = vmatpush.xpose.msra.mxu0 %v284
    %295 = vmatpush.xpose.msra.mxu0 %v281
    %296 = vmatpush.xpose.msra.mxu0 %v278
    %297 = vmatpush.xpose.msra.mxu0 %v275
    %298 = vmatpush.xpose.msra.mxu0 %v272
    %299 = vmatpush.xpose.msra.mxu0 %v269
    %300 = vmatpush.xpose.msra.mxu0 %v266
    %301 = vmatpush.xpose.msra.mxu0 %v263
    %302 = vmatpush.xpose.msra.mxu0 %v260
    %303 = vmatpush.xpose.msra.mxu0 %v257
    %304 = vmatpush.xpose.msra.mxu0 %v254
    %305 = vmatpush.xpose.msra.mxu0 %v251
    %306 = vmatpush.xpose.msra.mxu0 %v248
    %307 = vmatpush.xpose.msra.mxu0 %v245
    %308 = vmatmul.f32.gmra.mxu0 %v174
    %v309 = vpop.f32.mrf.mxu0
    %v310 = vadd.f32 %v242, %v309
    %311 = vdwg.mxu0
    %s312 = smul.u32 0, 128
    %v313 = vrcp.pop %v310
    %v314 = vmul.f32 %v310, %v313
    %v315 = vsub.f32 1.0, %v314
    %v316 = vmul.f32 %v313, %v315
    %v317 = vadd.f32 %v313, %v316
    %vm318 = vweird.f32 %v310
    %vm319 = vweird.f32 %v313
    %vm320 = vmor %vm318, %vm319
    %v321 = vsel %vm320, %v313, %v317
    %v322 = vand.u32 2147483647, %v310
    %vm323 = vcmp.eq.f32.partialorder %v322, 8.507059e+37
    %v324 = vand.u32 %v310, 2147483648
    %v325 = vor.u32 1.1754944e-38, %v324
    %v326 = vsel %vm323, %v325, %v321
    %s327 = sshra.s32 %s312, 7
    %s328 = sand.u32 %s312, 127
    %s329 = scalar_lea.vmem [#allocation2], %s327
    %330 = vst [vmem:[%s329] sm:$0x1] %v326
    %p331 = scmp.eq.s32.totalorder 0, 0
    // Predicated region
    $region10: #{tpu_custom_call.1} parent=1 // pred_check
      %p332 = pneg %p331
    $region11: #{tpu_custom_call.1} parent=1 // pred_check_branch
      %334 = sbr.rel (%p332) target = $region13
    $region12: #{tpu_custom_call.1} parent=1 // pred_region
      %v335 = vld [vmem:[#allocation2] sm:$0x1]
      %v336 = vld [vmem:[%s0] sm:$0x1]
      %337 = vrot.lane.b32.xlu0 %v335, 127
      %v338 = vpop.permute.xlu0 %337
      %339 = vrot.lane.b32.xlu0 %v336, 127
      %v340 = vpop.permute.xlu0 %339
      %vm341 = vcmp.gt.f32.partialorder %v336, %v340
      %v342 = vsel %vm341, 1.0, 0.0
      %vm343 = vcmp.lt.f32.partialorder %v336, %v340
      %v344 = vsel %vm343, 1.0, 0.0
      %v345 = vsub.f32 %v342, %v344
      %v346 = vsub.f32 %v336, %v340
      %v347 = vand.u32 2147483647, %v346
      %v348 = vadd.f32 %v345, 1e-07
      %v349 = vrcp.pop %v348
      %v350 = vmul.f32 %v348, %v349
      %v351 = vsub.f32 1.0, %v350
      %v352 = vmul.f32 %v349, %v351
      %v353 = vadd.f32 %v349, %v352
      %vm354 = vweird.f32 %v348
      %vm355 = vweird.f32 %v349
      %vm356 = vmor %vm354, %vm355
      %v357 = vsel %vm356, %v349, %v353
      %v358 = vand.u32 2147483647, %v348
      %vm359 = vcmp.eq.f32.partialorder %v358, 8.507059e+37
      %v360 = vand.u32 %v348, 2147483648
      %v361 = vor.u32 1.1754944e-38, %v360
      %v362 = vsel %vm359, %v361, %v357
      %v363 = vmul.f32 %v347, %v362
      %v364 = vadd.f32 %v338, %v363
      %v365 = vsub.f32 0.0, %v345
      %v366 = vsub.f32 %v335, %v364
      %v367 = vmul.f32 %v365, %v366
      %v368 = vmax.f32 %v367, 0.0
      %vm369 = vcmask 1040384
      %v370 = vsel %vm369, %v368, 0.0
      %371 = vadd.xlane.f32.xlu0 %v370
      %v372 = vpop.xlane.xlu0 %371
      %v373 = vmul.f32 %v372, 0.125
      %vm374 = vcmask 0
      %375 = vst.msk [vmem:[#allocation3] sm:$0x1] %vm374, %v373
    $region13: #{tpu_custom_call.1} parent=1 // pred_fallthru
      _
    // Predicated region
    $region14: #{tpu_custom_call.1} parent=1 // pred_check
      _
    $region15: #{tpu_custom_call.1} parent=1 // pred_check_branch
      %377 = sbr.rel (0) target = $region17
    $region16: #{tpu_custom_call.1} parent=1 // pred_region
      %379 = vsyncadd [#allocation4], 0
      %s381 = sshll.u32 [#allocation3], 4
      %s382 = int_to_ptr.vmem [resolvable:$true] %s381
      %s383 = sshll.u32 %s2, 4
      %s384 = int_to_ptr.hbm [resolvable:$true] %s383
      %386 = dma.vmem_to_hbm [thread:$0]  %s382, 16, %s384, [#allocation4]
    $region17: #{tpu_custom_call.1} parent=1 // pred_fallthru
      _
    // Predicated region
    $region18: #{tpu_custom_call.1} parent=1 // pred_check
      _
    $region19: #{tpu_custom_call.1} parent=1 // pred_check_branch
      %388 = sbr.rel (0) target = $region21
    $region20: #{tpu_custom_call.1} parent=1 // pred_region
      %390 = dma.done [#allocation4], 16
    $region21: #{tpu_custom_call.1} parent=1 // pred_fallthru
      _
    %391 = vsyncpa [#allocation4], 1

</llo_original>
